<compile_context>
chip_gen: v7x
topology: tpu7x:2x2x1
jax: 0.10.0
libtpu: 0.0.40
codegen_flags: <defaults>
</compile_context>

<pallas_src>
import functools

import jax
import jax.numpy as jnp
from jax.experimental import pallas as pl
from jax.experimental.pallas import tpu as pltpu

BN_EPS = 1e-5
LEAKY_SLOPE = 0.01  # PyTorch nn.LeakyReLU default


def _round_up(n, m):
    return ((n + m - 1) // m) * m


def gun_kernel(x_ref, w1_ref, b1_ref, w2_ref, b2_ref, o_ref):
    """Fused (BN-folded) GUN forward for one batch tile.

    x_ref : (tb, D*F)   flattened input rows (compute dtype)
    w1_ref: (D*F, D*E)  block-diagonal, BN1/BN2-folded shared trans weight
    b1_ref: (1, D*E)    folded trans bias (f32)
    w2_ref: (D*E, C)    MLP head weight (compute dtype)
    b2_ref: (1, C)      MLP head bias (f32)
    o_ref : (tb, C)     logits (f32) -- only the real C columns are stored
    """
    # Shared trans linear (both BatchNorms folded in) -> f32 accumulate on MXU.
    h = jnp.dot(x_ref[...], w1_ref[...], preferred_element_type=jnp.float32)
    h = h + b1_ref[...]
    # LeakyReLU in f32 on the VPU (v5e has no bf16 VALU path).
    h = jnp.where(h >= 0, h, LEAKY_SLOPE * h)
    # MLP head: (tb, D*E) @ (D*E, C) -> narrow-N matmul, f32 accumulate.
    out = jnp.dot(h.astype(w2_ref.dtype), w2_ref[...],
                  preferred_element_type=jnp.float32)
    o_ref[...] = out + b2_ref[...]


@functools.partial(jax.jit, static_argnames=("compute_dtype", "batch_tile"))
def gun_forward(x, params, *, compute_dtype=jnp.bfloat16, batch_tile=2048):
    """x: (B, D, F) float32 -> logits (B, C) float32 (eval-mode GUN)."""
    B, D, F = x.shape
    E = params["w_trans"].shape[1]
    C = params["w_mlp"].shape[1]
    DF, DE = D * F, D * E

    # ---- fold eval-mode BatchNorms into the shared trans linear -------------
    g1, be1, m1, v1 = params["bn1"]
    g2, be2, m2, v2 = params["bn2"]
    s1 = g1 * jax.lax.rsqrt(v1 + BN_EPS)                       # (F,)
    s2 = g2 * jax.lax.rsqrt(v2 + BN_EPS)                       # (E,)
    w_fold = (s1[:, None] * params["w_trans"]) * s2[None, :]   # (F, E)
    b_fold = (((be1 - m1 * s1) @ params["w_trans"]) * s2
              + (be2 - m2 * s2))                                # (E,)

    # ---- block-diagonal expansion so the D-group loop disappears ------------
    eye = jnp.eye(D, dtype=jnp.float32)
    w1 = (eye[:, None, :, None] * w_fold[None, :, None, :]).reshape(DF, DE)
    b1 = jnp.tile(b_fold, D).reshape(1, DE).astype(jnp.float32)
    w1 = w1.astype(compute_dtype)
    w2 = params["w_mlp"].astype(compute_dtype)                  # (DE, C)
    b2 = params["b_mlp"].reshape(1, C).astype(jnp.float32)

    # ---- batch tiling --------------------------------------------------------
    B8 = _round_up(B, 8)
    tb = min(_round_up(batch_tile, 8), B8)
    # v7x has 2 TensorCores: if the batch is big enough, make sure the
    # "parallel" batch axis has at least 2 tiles so both cores get work.
    if B8 >= 1024 and B8 <= tb:
        tb = _round_up(pl.cdiv(B8, 2), 8)
    num_tiles = pl.cdiv(B8, tb)
    B_pad = num_tiles * tb

    # Free contiguous flatten (B, D, F) -> (B, D*F); pad + cast fuse under jit.
    x2 = x.reshape(B, DF)
    if B_pad != B:
        x2 = jnp.pad(x2, ((0, B_pad - B), (0, 0)))
    x2 = x2.astype(compute_dtype)

    out = pl.pallas_call(
        gun_kernel,
        out_shape=jax.ShapeDtypeStruct((B_pad, C), jnp.float32),
        grid=(num_tiles,),
        in_specs=[
            pl.BlockSpec((tb, DF), lambda i: (i, 0)),     # x rows
            pl.BlockSpec((DF, DE), lambda i: (0, 0)),     # block-diag W_trans
            pl.BlockSpec((1, DE), lambda i: (0, 0)),      # folded trans bias
            pl.BlockSpec((DE, C), lambda i: (0, 0)),      # MLP head weight
            pl.BlockSpec((1, C), lambda i: (0, 0)),       # MLP head bias
        ],
        out_specs=pl.BlockSpec((tb, C), lambda i: (i, 0)),
        compiler_params=pltpu.CompilerParams(
            dimension_semantics=("parallel",)),
    )(x2, w1, b1, w2, b2)
    return out[:B]


def gun_reference(x, params):
    """Pure-JAX f32 reference of the eval-mode GUN forward (unfolded BN)."""
    B, D, F = x.shape
    g1, be1, m1, v1 = params["bn1"]
    g2, be2, m2, v2 = params["bn2"]
    xf = x.reshape(B * D, F)
    xf = (xf - m1) / jnp.sqrt(v1 + BN_EPS) * g1 + be1
    h = xf @ params["w_trans"]
    h = (h - m2) / jnp.sqrt(v2 + BN_EPS) * g2 + be2
    h = jnp.where(h >= 0, h, LEAKY_SLOPE * h)
    hr = h.reshape(B, -1)
    return hr @ params["w_mlp"] + params["b_mlp"][0]


def make_params(key, F, E, D, C):
    ks = jax.random.split(key, 11)
    lim_tr = (6.0 / (F + E)) ** 0.5
    w_trans = jax.random.uniform(ks[0], (F, E), jnp.float32, -lim_tr, lim_tr)
    lim_mlp = (6.0 / (D * E + C)) ** 0.5
    w_mlp = jax.random.uniform(ks[1], (D * E, C), jnp.float32, -lim_mlp, lim_mlp)
    b_mlp = jax.random.uniform(ks[2], (1, C), jnp.float32, -0.1, 0.1)
    # BatchNorm params: rows = [gamma, beta, running_mean, running_var]
    bn1 = jnp.stack([
        1.0 + 0.1 * jax.random.normal(ks[3], (F,), jnp.float32),
        0.05 * jax.random.normal(ks[4], (F,), jnp.float32),
        0.1 * jax.random.normal(ks[5], (F,), jnp.float32),
        0.5 + jax.random.uniform(ks[6], (F,), jnp.float32),
    ])
    bn2 = jnp.stack([
        1.0 + 0.1 * jax.random.normal(ks[7], (E,), jnp.float32),
        0.05 * jax.random.normal(ks[8], (E,), jnp.float32),
        0.1 * jax.random.normal(ks[9], (E,), jnp.float32),
        0.5 + jax.random.uniform(ks[10], (E,), jnp.float32),
    ])
    return {"w_trans": w_trans, "w_mlp": w_mlp, "b_mlp": b_mlp,
            "bn1": bn1, "bn2": bn2}


if __name__ == "__main__":
    # Small shapes: batch=8, un_layer=2 -> D=3 groups, num_feature=32,
    # emb_size=128, num_classes=8.
    B, D, F, E, C = 8, 3, 32, 128, 8

    key = jax.random.PRNGKey(0)
    kx, kp = jax.random.split(key)
    x = jax.random.normal(kx, (B, D, F), jnp.float32)
    params = make_params(kp, F, E, D, C)

    ref = gun_reference(x, params)

    # bf16 operands (the v6e/v7x fast MXU path), f32 accumulation/elementwise.
    out_bf16 = jax.block_until_ready(
        gun_forward(x, params, compute_dtype=jnp.bfloat16))
    assert out_bf16.shape == (B, C), out_bf16.shape
    assert jnp.allclose(out_bf16, ref, atol=5e-2, rtol=5e-2), \
        float(jnp.max(jnp.abs(out_bf16 - ref)))

    # f32 operands: tight check of BN folding / block-diagonal restructuring.
    out_f32 = jax.block_until_ready(
        gun_forward(x, params, compute_dtype=jnp.float32))
    assert jnp.allclose(out_f32, ref, atol=1e-4, rtol=1e-4), \
        float(jnp.max(jnp.abs(out_f32 - ref)))

    print("KERNEL_OK")
</pallas_src>

<mosaic_0001>
module attributes {stable_mosaic.version = 11 : i64} {
  func.func @gun_kernel(%arg0: i32, %arg1: memref<8x96xbf16, #tpu.memory_space<vmem>>, %arg2: memref<96x384xbf16, #tpu.memory_space<vmem>>, %arg3: memref<1x384xf32, #tpu.memory_space<vmem>>, %arg4: memref<384x8xbf16, #tpu.memory_space<vmem>>, %arg5: memref<1x8xf32, #tpu.memory_space<vmem>>, %arg6: memref<8x8xf32, #tpu.memory_space<vmem>>) attributes {dimension_semantics = [#tpu.dimension_semantics<parallel>], iteration_bounds = array<i64: 1>, scalar_prefetch = 0 : i64, scratch_operands = 0 : i64, tpu.core_type = #tpu.core_type<tc>, window_params = [{transform_indices = @transform_0, window_bounds = array<i64: 8, 96>}, {pipeline_mode = #tpu.pipeline_mode<synchronous>, transform_indices = @transform_1, window_bounds = array<i64: 96, 384>}, {pipeline_mode = #tpu.pipeline_mode<synchronous>, transform_indices = @transform_2, window_bounds = array<i64: 1, 384>}, {pipeline_mode = #tpu.pipeline_mode<synchronous>, transform_indices = @transform_3, window_bounds = array<i64: 384, 8>}, {pipeline_mode = #tpu.pipeline_mode<synchronous>, transform_indices = @transform_4, window_bounds = array<i64: 1, 8>}, {transform_indices = @transform_5, window_bounds = array<i64: 8, 8>}]} {
    %c0 = arith.constant 0 : index
    %c0_0 = arith.constant 0 : index
    %0 = vector.load %arg1[%c0, %c0_0] : memref<8x96xbf16, #tpu.memory_space<vmem>>, vector<8x96xbf16>
    %c0_1 = arith.constant 0 : index
    %c0_2 = arith.constant 0 : index
    %1 = vector.load %arg2[%c0_1, %c0_2] : memref<96x384xbf16, #tpu.memory_space<vmem>>, vector<96x384xbf16>
    %cst = arith.constant dense<0.000000e+00> : vector<8x384xf32>
    %2 = tpu.matmul %0, %1, %cst {dimension_numbers = #tpu.dot_dimension_numbers<[1], [0], [0], [1], [0, 0, 1, 1], [], []>} : vector<8x96xbf16>, vector<96x384xbf16>, vector<8x384xf32> -> vector<8x384xf32>
    %c0_3 = arith.constant 0 : index
    %c0_4 = arith.constant 0 : index
    %3 = vector.load %arg3[%c0_3, %c0_4] : memref<1x384xf32, #tpu.memory_space<vmem>>, vector<1x384xf32>
    %4 = vector.broadcast %3 : vector<1x384xf32> to vector<8x384xf32>
    %5 = arith.addf %2, %4 : vector<8x384xf32>
    %cst_5 = arith.constant 0.000000e+00 : f32
    %6 = vector.broadcast %cst_5 : f32 to vector<8x384xf32>
    %7 = arith.cmpf oge, %5, %6 : vector<8x384xf32>
    %cst_6 = arith.constant 0.00999999977 : f32
    %8 = vector.broadcast %cst_6 : f32 to vector<8x384xf32>
    %9 = arith.mulf %8, %5 : vector<8x384xf32>
    %10 = arith.select %7, %5, %9 : vector<8x384xi1>, vector<8x384xf32>
    %11 = arith.truncf %10 : vector<8x384xf32> to vector<8x384xbf16>
    %c0_7 = arith.constant 0 : index
    %c0_8 = arith.constant 0 : index
    %12 = vector.load %arg4[%c0_7, %c0_8] : memref<384x8xbf16, #tpu.memory_space<vmem>>, vector<384x8xbf16>
    %cst_9 = arith.constant dense<0.000000e+00> : vector<8x8xf32>
    %13 = tpu.matmul %11, %12, %cst_9 {dimension_numbers = #tpu.dot_dimension_numbers<[1], [0], [0], [1], [0, 0, 1, 1], [], []>} : vector<8x384xbf16>, vector<384x8xbf16>, vector<8x8xf32> -> vector<8x8xf32>
    %c0_10 = arith.constant 0 : index
    %c0_11 = arith.constant 0 : index
    %14 = vector.load %arg5[%c0_10, %c0_11] : memref<1x8xf32, #tpu.memory_space<vmem>>, vector<1x8xf32>
    %15 = vector.broadcast %14 : vector<1x8xf32> to vector<8x8xf32>
    %16 = arith.addf %13, %15 : vector<8x8xf32>
    %c0_12 = arith.constant 0 : index
    %c0_13 = arith.constant 0 : index
    %17 = vector.load %arg6[%c0_12, %c0_13] : memref<8x8xf32, #tpu.memory_space<vmem>>, vector<8x8xf32>
    tpu.vector_store %arg6[%c0_12, %c0_13], %16 {strides = array<i32>} : memref<8x8xf32, #tpu.memory_space<vmem>>, vector<8x8xf32>,
    return
  }
  func.func @transform_0(%arg0: i32) -> (i32, i32) {
    %c0_i32 = arith.constant 0 : i32
    %c0_i32_0 = arith.constant 0 : i32
    return %arg0, %c0_i32 : i32, i32
  }
  func.func @transform_1(%arg0: i32) -> (i32, i32) {
    %c0_i32 = arith.constant 0 : i32
    %c0_i32_0 = arith.constant 0 : i32
    %c0_i32_1 = arith.constant 0 : i32
    return %c0_i32, %c0_i32_0 : i32, i32
  }
  func.func @transform_2(%arg0: i32) -> (i32, i32) {
    %c0_i32 = arith.constant 0 : i32
    %c0_i32_0 = arith.constant 0 : i32
    %c0_i32_1 = arith.constant 0 : i32
    return %c0_i32, %c0_i32_0 : i32, i32
  }
  func.func @transform_3(%arg0: i32) -> (i32, i32) {
    %c0_i32 = arith.constant 0 : i32
    %c0_i32_0 = arith.constant 0 : i32
    %c0_i32_1 = arith.constant 0 : i32
    return %c0_i32, %c0_i32_0 : i32, i32
  }
  func.func @transform_4(%arg0: i32) -> (i32, i32) {
    %c0_i32 = arith.constant 0 : i32
    %c0_i32_0 = arith.constant 0 : i32
    %c0_i32_1 = arith.constant 0 : i32
    return %c0_i32, %c0_i32_0 : i32, i32
  }
  func.func @transform_5(%arg0: i32) -> (i32, i32) {
    %c0_i32 = arith.constant 0 : i32
    %c0_i32_0 = arith.constant 0 : i32
    return %arg0, %c0_i32 : i32, i32
  }
}

</mosaic_0001>

<llo_original>
// kernel: gun_forward.1
$region0: #{gun_forward.1}
  #allocation0 [shape = 'u32[]', space=smem, size = 0x4, offset = 0x4, fixed_abs, tag = 'smem constant byte address 0x4 - core index']
  #allocation1 [shape = 'u32[144,128]{1,0:T(1,128)}', space=vmem, size = 0x12000, scoped, tag = 'internal scratch']
  %s0 = inlined_call_operand.vmem [shape: bf16[8,96], index: 0, kind: input, shape index: {}]
  %s1 = inlined_call_operand.vmem [shape: bf16[96,384], index: 1, kind: input, shape index: {}]
  %s2 = inlined_call_operand.vmem [shape: f32[1,384], index: 2, kind: input, shape index: {}]
  %s3 = inlined_call_operand.vmem [shape: bf16[384,8], index: 3, kind: input, shape index: {}]
  %s4 = inlined_call_operand.vmem [shape: f32[1,8], index: 4, kind: input, shape index: {}]
  %s5 = inlined_call_operand.hbm [shape: f32[8,8], index: 5, kind: output, shape index: {}]
  %s6 = sld [smem:[#allocation0]]
  $region30: #{gun_forward.1} parent=0
    _
  %s8 = ssub.s32 1, %s6
  %s9 = scalar_select 0, %s8, %s6
  $region1: #{gun_forward.1} parent=0
    #allocation2 [shape = 'u8[4096]{0}', space=vmem, size = 0x1000, scoped, tag = 'output window, operand 0, single buffered']
    #allocation3 [shape = 's32[1]{0}', space=sflag, size = 0x4, scoped, tag = 'scoped memory for gun_forward.1']
    %10 = vsyncpa [#allocation3], 0
    // Predicated region
    $region2: #{gun_forward.1} parent=1 // pred_check
      _
    $region3: #{gun_forward.1} parent=1 // pred_check_branch
      %12 = sbr.rel (0) target = $region5
    $region4: #{gun_forward.1} parent=1 // pred_region
      _
    $region5: #{gun_forward.1} parent=1 // pred_fallthru
      _
    // Predicated region
    $region6: #{gun_forward.1} parent=1 // pred_check
      _
    $region7: #{gun_forward.1} parent=1 // pred_check_branch
      %14 = sbr.rel (0) target = $region9
    $region8: #{gun_forward.1} parent=1 // pred_region
      _
    $region9: #{gun_forward.1} parent=1 // pred_fallthru
      _
    // Predicated region
    $region10: #{gun_forward.1} parent=1 // pred_check
      _
    $region11: #{gun_forward.1} parent=1 // pred_check_branch
      %16 = sbr.rel (0) target = $region13
    $region12: #{gun_forward.1} parent=1 // pred_region
      _
    $region13: #{gun_forward.1} parent=1 // pred_fallthru
      _
    // Predicated region
    $region14: #{gun_forward.1} parent=1 // pred_check
      _
    $region15: #{gun_forward.1} parent=1 // pred_check_branch
      %18 = sbr.rel (0) target = $region17
    $region16: #{gun_forward.1} parent=1 // pred_region
      _
    $region17: #{gun_forward.1} parent=1 // pred_fallthru
      _
    // Predicated region
    $region18: #{gun_forward.1} parent=1 // pred_check
      _
    $region19: #{gun_forward.1} parent=1 // pred_check_branch
      %20 = sbr.rel (0) target = $region21
    $region20: #{gun_forward.1} parent=1 // pred_region
      _
    $region21: #{gun_forward.1} parent=1 // pred_fallthru
      _
    %v22 = vld [vmem:[%s0] sm:$0xf]
    %v23 = vld [vmem:[%s1] sm:$0xff]
    %v24 = vld [vmem:[%s1 + $0x8] sm:$0xf]
    %v25 = vld [vmem:[%s1 + $0xc] sm:$0xff]
    %v26 = vld [vmem:[%s1 + $0x14] sm:$0xf]
    %v27 = vld [vmem:[%s1 + $0x18] sm:$0xff]
    %v28 = vld [vmem:[%s1 + $0x20] sm:$0xf]
    %v29 = vld [vmem:[%s1 + $0x24] sm:$0xff]
    %v30 = vld [vmem:[%s1 + $0x2c] sm:$0xf]
    %v31 = vld [vmem:[%s1 + $0x30] sm:$0xff]
    %v32 = vld [vmem:[%s1 + $0x38] sm:$0xf]
    %v33 = vld [vmem:[%s1 + $0x3c] sm:$0xff]
    %v34 = vld [vmem:[%s1 + $0x44] sm:$0xf]
    %v35 = vld [vmem:[%s1 + $0x48] sm:$0xff]
    %v36 = vld [vmem:[%s1 + $0x50] sm:$0xf]
    %v37 = vld [vmem:[%s1 + $0x54] sm:$0xff]
    %v38 = vld [vmem:[%s1 + $0x5c] sm:$0xf]
    %v39 = vld [vmem:[%s1 + $0x60] sm:$0xff]
    %v40 = vld [vmem:[%s1 + $0x68] sm:$0xf]
    %v41 = vld [vmem:[%s1 + $0x6c] sm:$0xff]
    %v42 = vld [vmem:[%s1 + $0x74] sm:$0xf]
    %v43 = vld [vmem:[%s1 + $0x78] sm:$0xff]
    %v44 = vld [vmem:[%s1 + $0x80] sm:$0xf]
    %v45 = vld [vmem:[%s1 + $0x84] sm:$0xff]
    %v46 = vld [vmem:[%s1 + $0x8c] sm:$0xf]
    %v47 = vld [vmem:[%s2] sm:$0x7]
    %v49 = vlaneseq
    %v50 = vshrl.u32 %v49, 7
    %v51 = vsub.s32 0, %v50
    %v52 = vrot.slane %v47, %v51
    %v53 = vlaneseq
    %v54 = vshrl.u32 %v53, 7
    %v55 = vsub.s32 1, %v54
    %v56 = vrot.slane %v47, %v55
    %v57 = vlaneseq
    %v58 = vshrl.u32 %v57, 7
    %v59 = vsub.s32 2, %v58
    %v60 = vrot.slane %v47, %v59
    %v88 = vunpack.c.l.b16 %v23
    %v89 = vunpack.c.h.b16 %v23
    %v90 = vunpack.c.l.b16 %v24
    %v91 = vunpack.c.l.b16 %v25
    %v92 = vunpack.c.h.b16 %v25
    %v93 = vunpack.c.l.b16 %v26
    %v94 = vunpack.c.l.b16 %v27
    %v95 = vunpack.c.h.b16 %v27
    %v96 = vunpack.c.l.b16 %v28
    %v97 = vunpack.c.l.b16 %v29
    %v98 = vunpack.c.h.b16 %v29
    %v99 = vunpack.c.l.b16 %v30
    %v100 = vunpack.c.l.b16 %v31
    %v101 = vunpack.c.h.b16 %v31
    %v102 = vunpack.c.l.b16 %v32
    %v103 = vunpack.c.l.b16 %v33
    %v104 = vunpack.c.h.b16 %v33
    %v105 = vunpack.c.l.b16 %v34
    %v106 = vunpack.c.l.b16 %v35
    %v107 = vunpack.c.h.b16 %v35
    %v108 = vunpack.c.l.b16 %v36
    %v109 = vunpack.c.l.b16 %v37
    %v110 = vunpack.c.h.b16 %v37
    %v111 = vunpack.c.l.b16 %v38
    %v112 = vunpack.c.l.b16 %v39
    %v113 = vunpack.c.h.b16 %v39
    %v114 = vunpack.c.l.b16 %v40
    %v115 = vunpack.c.l.b16 %v41
    %v116 = vunpack.c.h.b16 %v41
    %v117 = vunpack.c.l.b16 %v42
    %v118 = vunpack.c.l.b16 %v43
    %v119 = vunpack.c.h.b16 %v43
    %v120 = vunpack.c.l.b16 %v44
    %v121 = vunpack.c.l.b16 %v45
    %v122 = vunpack.c.h.b16 %v45
    %v123 = vunpack.c.l.b16 %v46
    %v124 = vpack.c.b16 %v91, %v88
    %v125 = vpack.c.b16 %v92, %v89
    %v126 = vpack.c.b16 %v93, %v90
    %v127 = vpack.c.b16 %v97, %v94
    %v128 = vpack.c.b16 %v98, %v95
    %v129 = vpack.c.b16 %v99, %v96
    %v130 = vpack.c.b16 %v103, %v100
    %v131 = vpack.c.b16 %v104, %v101
    %v132 = vpack.c.b16 %v105, %v102
    %v133 = vpack.c.b16 %v109, %v106
    %v134 = vpack.c.b16 %v110, %v107
    %v135 = vpack.c.b16 %v111, %v108
    %v136 = vpack.c.b16 %v115, %v112
    %v137 = vpack.c.b16 %v116, %v113
    %v138 = vpack.c.b16 %v117, %v114
    %v139 = vpack.c.b16 %v121, %v118
    %v140 = vpack.c.b16 %v122, %v119
    %v141 = vpack.c.b16 %v123, %v120
    %vm160 = vcmask 785408
    %v162 = vsel %vm160, %v22, 0
    %164 = vmatprep.subr.bf16.mxu0 %v125
    %165 = vmatpush1.bf16.msra.mxu0 %v124
    %166 = vmatprep.subr.bf16.mxu0 %v128
    %167 = vmatpush1.bf16.msra.mxu0 %v127
    %168 = vmatprep.subr.bf16.mxu0 %v131
    %169 = vmatpush1.bf16.msra.mxu0 %v130
    %170 = vmatprep.subr.bf16.mxu0 %v134
    %171 = vmatpush1.bf16.msra.mxu0 %v133
    %172 = vmatprep.subr.bf16.mxu0 %v137
    %173 = vmatpush1.bf16.msra.mxu0 %v136
    %174 = vmatprep.subr.bf16.mxu0 %v140
    %175 = vmatpush1.bf16.msra.mxu0 %v139
    %176 = vmatprep.subr.bf16.mxu0 0
    %177 = vmatpush1.bf16.msra.mxu0 0
    %178 = vmatprep.subr.bf16.mxu0 0
    %179 = vmatpush1.bf16.msra.mxu0 0
    %180 = vmatprep.subr.bf16.mxu0 0
    %181 = vmatpush1.bf16.msra.mxu0 0
    %182 = vmatprep.subr.bf16.mxu0 0
    %183 = vmatpush1.bf16.msra.mxu0 0
    %184 = vmatprep.subr.bf16.mxu0 0
    %185 = vmatpush1.bf16.msra.mxu0 0
    %186 = vmatprep.subr.bf16.mxu0 0
    %187 = vmatpush1.bf16.msra.mxu0 0
    %188 = vmatprep.subr.bf16.mxu0 0
    %189 = vmatpush1.bf16.msra.mxu0 0
    %190 = vmatprep.subr.bf16.mxu0 0
    %191 = vmatpush1.bf16.msra.mxu0 0
    %192 = vmatprep.subr.bf16.mxu0 0
    %193 = vmatpush1.bf16.msra.mxu0 0
    %194 = vmatprep.subr.bf16.mxu0 0
    %195 = vmatpush1.bf16.msra.mxu0 0
    %196 = vmatprep.mubr.bf16.mxu0 0
    %197 = vmatmul.mubr.bf16.gmra.mrb[0].mxu0 %v162
    %v198 = vpop.f32.mrb[0].mxu0
    %v199 = vadd.f32 %v52, %v198
    %v200 = vpop.f32.mrb[0].mxu0
    %v201 = vadd.f32 %v56, %v200
    %v202 = vpop.f32.mrb[0].mxu0
    %v203 = vpop.f32.mrb[0].mxu0
    %204 = vdwg.mxu0
    %205 = vmatprep.subr.bf16.mxu0 0
    %206 = vmatpush1.bf16.msra.mxu0 %v126
    %207 = vmatprep.subr.bf16.mxu0 0
    %208 = vmatpush1.bf16.msra.mxu0 %v129
    %209 = vmatprep.subr.bf16.mxu0 0
    %210 = vmatpush1.bf16.msra.mxu0 %v132
    %211 = vmatprep.subr.bf16.mxu0 0
    %212 = vmatpush1.bf16.msra.mxu0 %v135
    %213 = vmatprep.subr.bf16.mxu0 0
    %214 = vmatpush1.bf16.msra.mxu0 %v138
    %215 = vmatprep.subr.bf16.mxu0 0
    %216 = vmatpush1.bf16.msra.mxu0 %v141
    %217 = vmatprep.subr.bf16.mxu0 0
    %218 = vmatpush1.bf16.msra.mxu0 0
    %219 = vmatprep.subr.bf16.mxu0 0
    %220 = vmatpush1.bf16.msra.mxu0 0
    %221 = vmatprep.subr.bf16.mxu0 0
    %222 = vmatpush1.bf16.msra.mxu0 0
    %223 = vmatprep.subr.bf16.mxu0 0
    %224 = vmatpush1.bf16.msra.mxu0 0
    %225 = vmatprep.subr.bf16.mxu0 0
    %226 = vmatpush1.bf16.msra.mxu0 0
    %227 = vmatprep.subr.bf16.mxu0 0
    %228 = vmatpush1.bf16.msra.mxu0 0
    %229 = vmatprep.subr.bf16.mxu0 0
    %230 = vmatpush1.bf16.msra.mxu0 0
    %231 = vmatprep.subr.bf16.mxu0 0
    %232 = vmatpush1.bf16.msra.mxu0 0
    %233 = vmatprep.subr.bf16.mxu0 0
    %234 = vmatpush1.bf16.msra.mxu0 0
    %235 = vmatprep.subr.bf16.mxu0 0
    %236 = vmatpush1.bf16.msra.mxu0 0
    %237 = vmatprep.mubr.bf16.mxu0 0
    %238 = vmatmul.mubr.bf16.gmra.mrb[0].mxu0 %v162
    %v239 = vpop.f32.mrb[0].mxu0
    %v240 = vadd.f32 %v60, %v239
    %v241 = vpop.f32.mrb[0].mxu0
    %v242 = vpop.f32.mrb[0].mxu0
    %v243 = vpop.f32.mrb[0].mxu0
    %244 = vdwg.mxu0
    %vm245 = vcmp.ge.f32.partialorder %v199, 0.0
    %vm246 = vcmp.ge.f32.partialorder %v201, 0.0
    %vm247 = vcmp.ge.f32.partialorder %v240, 0.0
    %v248 = vmul.f32 %v199, 0.01
    %v249 = vmul.f32 %v201, 0.01
    %v250 = vmul.f32 %v240, 0.01
    %v251 = vsel %vm245, %v199, %v248
    %v252 = vsel %vm246, %v201, %v249
    %v253 = vsel %vm247, %v240, %v250
    %v254 = vpack.c.bf16 %v251, %v251
    %v255 = vpack.c.bf16 %v252, %v252
    %v256 = vpack.c.bf16 %v253, %v253
    %v257 = vld [vmem:[%s3] sm:$0xf]
    %v258 = vld [vmem:[%s3 + $0x4] sm:$0xf]
    %v259 = vld [vmem:[%s3 + $0x8] sm:$0xf]
    %v260 = vld [vmem:[%s3 + $0xc] sm:$0xf]
    %v261 = vld [vmem:[%s3 + $0x10] sm:$0xf]
    %v262 = vld [vmem:[%s3 + $0x14] sm:$0xf]
    %v263 = vld [vmem:[%s3 + $0x18] sm:$0xf]
    %v264 = vld [vmem:[%s3 + $0x1c] sm:$0xf]
    %v265 = vld [vmem:[%s3 + $0x20] sm:$0xf]
    %v266 = vld [vmem:[%s3 + $0x24] sm:$0xf]
    %v267 = vld [vmem:[%s3 + $0x28] sm:$0xf]
    %v268 = vld [vmem:[%s3 + $0x2c] sm:$0xf]
    %v269 = vld [vmem:[%s3 + $0x30] sm:$0xf]
    %v270 = vld [vmem:[%s3 + $0x34] sm:$0xf]
    %v271 = vld [vmem:[%s3 + $0x38] sm:$0xf]
    %v272 = vld [vmem:[%s3 + $0x3c] sm:$0xf]
    %v273 = vld [vmem:[%s3 + $0x40] sm:$0xf]
    %v274 = vld [vmem:[%s3 + $0x44] sm:$0xf]
    %v275 = vld [vmem:[%s3 + $0x48] sm:$0xf]
    %v276 = vld [vmem:[%s3 + $0x4c] sm:$0xf]
    %v277 = vld [vmem:[%s3 + $0x50] sm:$0xf]
    %v278 = vld [vmem:[%s3 + $0x54] sm:$0xf]
    %v279 = vld [vmem:[%s3 + $0x58] sm:$0xf]
    %v280 = vld [vmem:[%s3 + $0x5c] sm:$0xf]
    %v281 = vld [vmem:[%s3 + $0x60] sm:$0xf]
    %v282 = vld [vmem:[%s3 + $0x64] sm:$0xf]
    %v283 = vld [vmem:[%s3 + $0x68] sm:$0xf]
    %v284 = vld [vmem:[%s3 + $0x6c] sm:$0xf]
    %v285 = vld [vmem:[%s3 + $0x70] sm:$0xf]
    %v286 = vld [vmem:[%s3 + $0x74] sm:$0xf]
    %v287 = vld [vmem:[%s3 + $0x78] sm:$0xf]
    %v288 = vld [vmem:[%s3 + $0x7c] sm:$0xf]
    %v289 = vld [vmem:[%s3 + $0x80] sm:$0xf]
    %v290 = vld [vmem:[%s3 + $0x84] sm:$0xf]
    %v291 = vld [vmem:[%s3 + $0x88] sm:$0xf]
    %v292 = vld [vmem:[%s3 + $0x8c] sm:$0xf]
    %v293 = vld [vmem:[%s3 + $0x90] sm:$0xf]
    %v294 = vld [vmem:[%s3 + $0x94] sm:$0xf]
    %v295 = vld [vmem:[%s3 + $0x98] sm:$0xf]
    %v296 = vld [vmem:[%s3 + $0x9c] sm:$0xf]
    %v297 = vld [vmem:[%s3 + $0xa0] sm:$0xf]
    %v298 = vld [vmem:[%s3 + $0xa4] sm:$0xf]
    %v299 = vld [vmem:[%s3 + $0xa8] sm:$0xf]
    %v300 = vld [vmem:[%s3 + $0xac] sm:$0xf]
    %v301 = vld [vmem:[%s3 + $0xb0] sm:$0xf]
    %v302 = vld [vmem:[%s3 + $0xb4] sm:$0xf]
    %v303 = vld [vmem:[%s3 + $0xb8] sm:$0xf]
    %v304 = vld [vmem:[%s3 + $0xbc] sm:$0xf]
    %v305 = vld [vmem:[%s4] sm:$0x1]
    %v307 = vlaneseq
    %v308 = vshrl.u32 %v307, 7
    %v309 = vsub.s32 0, %v308
    %v310 = vrot.slane %v305, %v309
    %v360 = vunpack.c.l.b16 %v257
    %v361 = vunpack.c.l.b16 %v258
    %v362 = vunpack.c.l.b16 %v259
    %v363 = vunpack.c.l.b16 %v260
    %v364 = vunpack.c.l.b16 %v261
    %v365 = vunpack.c.l.b16 %v262
    %v366 = vunpack.c.l.b16 %v263
    %v367 = vunpack.c.l.b16 %v264
    %v368 = vunpack.c.l.b16 %v265
    %v369 = vunpack.c.l.b16 %v266
    %v370 = vunpack.c.l.b16 %v267
    %v371 = vunpack.c.l.b16 %v268
    %v372 = vunpack.c.l.b16 %v269
    %v373 = vunpack.c.l.b16 %v270
    %v374 = vunpack.c.l.b16 %v271
    %v375 = vunpack.c.l.b16 %v272
    %v376 = vunpack.c.l.b16 %v273
    %v377 = vunpack.c.l.b16 %v274
    %v378 = vunpack.c.l.b16 %v275
    %v379 = vunpack.c.l.b16 %v276
    %v380 = vunpack.c.l.b16 %v277
    %v381 = vunpack.c.l.b16 %v278
    %v382 = vunpack.c.l.b16 %v279
    %v383 = vunpack.c.l.b16 %v280
    %v384 = vunpack.c.l.b16 %v281
    %v385 = vunpack.c.l.b16 %v282
    %v386 = vunpack.c.l.b16 %v283
    %v387 = vunpack.c.l.b16 %v284
    %v388 = vunpack.c.l.b16 %v285
    %v389 = vunpack.c.l.b16 %v286
    %v390 = vunpack.c.l.b16 %v287
    %v391 = vunpack.c.l.b16 %v288
    %v392 = vunpack.c.l.b16 %v289
    %v393 = vunpack.c.l.b16 %v290
    %v394 = vunpack.c.l.b16 %v291
    %v395 = vunpack.c.l.b16 %v292
    %v396 = vunpack.c.l.b16 %v293
    %v397 = vunpack.c.l.b16 %v294
    %v398 = vunpack.c.l.b16 %v295
    %v399 = vunpack.c.l.b16 %v296
    %v400 = vunpack.c.l.b16 %v297
    %v401 = vunpack.c.l.b16 %v298
    %v402 = vunpack.c.l.b16 %v299
    %v403 = vunpack.c.l.b16 %v300
    %v404 = vunpack.c.l.b16 %v301
    %v405 = vunpack.c.l.b16 %v302
    %v406 = vunpack.c.l.b16 %v303
    %v407 = vunpack.c.l.b16 %v304
    %v408 = vpack.c.b16 %v361, %v360
    %v409 = vpack.c.b16 %v363, %v362
    %v410 = vpack.c.b16 %v365, %v364
    %v411 = vpack.c.b16 %v367, %v366
    %v412 = vpack.c.b16 %v369, %v368
    %v413 = vpack.c.b16 %v371, %v370
    %v414 = vpack.c.b16 %v373, %v372
    %v415 = vpack.c.b16 %v375, %v374
    %v416 = vpack.c.b16 %v377, %v376
    %v417 = vpack.c.b16 %v379, %v378
    %v418 = vpack.c.b16 %v381, %v380
    %v419 = vpack.c.b16 %v383, %v382
    %v420 = vpack.c.b16 %v385, %v384
    %v421 = vpack.c.b16 %v387, %v386
    %v422 = vpack.c.b16 %v389, %v388
    %v423 = vpack.c.b16 %v391, %v390
    %v424 = vpack.c.b16 %v393, %v392
    %v425 = vpack.c.b16 %v395, %v394
    %v426 = vpack.c.b16 %v397, %v396
    %v427 = vpack.c.b16 %v399, %v398
    %v428 = vpack.c.b16 %v401, %v400
    %v429 = vpack.c.b16 %v403, %v402
    %v430 = vpack.c.b16 %v405, %v404
    %v431 = vpack.c.b16 %v407, %v406
    %456 = vmatprep.subr.bf16.mxu0 0
    %457 = vmatpush1.bf16.msra.mxu0 %v408
    %458 = vmatprep.subr.bf16.mxu0 0
    %459 = vmatpush1.bf16.msra.mxu0 %v409
    %460 = vmatprep.subr.bf16.mxu0 0
    %461 = vmatpush1.bf16.msra.mxu0 %v410
    %462 = vmatprep.subr.bf16.mxu0 0
    %463 = vmatpush1.bf16.msra.mxu0 %v411
    %464 = vmatprep.subr.bf16.mxu0 0
    %465 = vmatpush1.bf16.msra.mxu0 %v412
    %466 = vmatprep.subr.bf16.mxu0 0
    %467 = vmatpush1.bf16.msra.mxu0 %v413
    %468 = vmatprep.subr.bf16.mxu0 0
    %469 = vmatpush1.bf16.msra.mxu0 %v414
    %470 = vmatprep.subr.bf16.mxu0 0
    %471 = vmatpush1.bf16.msra.mxu0 %v415
    %472 = vmatprep.subr.bf16.mxu0 0
    %473 = vmatpush1.bf16.msra.mxu0 %v416
    %474 = vmatprep.subr.bf16.mxu0 0
    %475 = vmatpush1.bf16.msra.mxu0 %v417
    %476 = vmatprep.subr.bf16.mxu0 0
    %477 = vmatpush1.bf16.msra.mxu0 %v418
    %478 = vmatprep.subr.bf16.mxu0 0
    %479 = vmatpush1.bf16.msra.mxu0 %v419
    %480 = vmatprep.subr.bf16.mxu0 0
    %481 = vmatpush1.bf16.msra.mxu0 %v420
    %482 = vmatprep.subr.bf16.mxu0 0
    %483 = vmatpush1.bf16.msra.mxu0 %v421
    %484 = vmatprep.subr.bf16.mxu0 0
    %485 = vmatpush1.bf16.msra.mxu0 %v422
    %486 = vmatprep.subr.bf16.mxu0 0
    %487 = vmatpush1.bf16.msra.mxu0 %v423
    %488 = vmatprep.mubr.bf16.mxu0 %v255
    %489 = vmatmul.mubr.bf16.gmra.mrb[0].mxu0 %v254
    %v490 = vpop.f32.mrb[0].mxu0
    %v491 = vadd.f32 %v310, %v490
    %v492 = vpop.f32.mrb[0].mxu0
    %v493 = vpop.f32.mrb[0].mxu0
    %v494 = vpop.f32.mrb[0].mxu0
    %495 = vdwg.mxu0
    %496 = vmatprep.subr.bf16.mxu0 0
    %497 = vmatpush1.bf16.msra.mxu0 %v424
    %498 = vmatprep.subr.bf16.mxu0 0
    %499 = vmatpush1.bf16.msra.mxu0 %v425
    %500 = vmatprep.subr.bf16.mxu0 0
    %501 = vmatpush1.bf16.msra.mxu0 %v426
    %502 = vmatprep.subr.bf16.mxu0 0
    %503 = vmatpush1.bf16.msra.mxu0 %v427
    %504 = vmatprep.subr.bf16.mxu0 0
    %505 = vmatpush1.bf16.msra.mxu0 %v428
    %506 = vmatprep.subr.bf16.mxu0 0
    %507 = vmatpush1.bf16.msra.mxu0 %v429
    %508 = vmatprep.subr.bf16.mxu0 0
    %509 = vmatpush1.bf16.msra.mxu0 %v430
    %510 = vmatprep.subr.bf16.mxu0 0
    %511 = vmatpush1.bf16.msra.mxu0 %v431
    %512 = vmatprep.subr.bf16.mxu0 0
    %513 = vmatpush1.bf16.msra.mxu0 0
    %514 = vmatprep.subr.bf16.mxu0 0
    %515 = vmatpush1.bf16.msra.mxu0 0
    %516 = vmatprep.subr.bf16.mxu0 0
    %517 = vmatpush1.bf16.msra.mxu0 0
    %518 = vmatprep.subr.bf16.mxu0 0
    %519 = vmatpush1.bf16.msra.mxu0 0
    %520 = vmatprep.subr.bf16.mxu0 0
    %521 = vmatpush1.bf16.msra.mxu0 0
    %522 = vmatprep.subr.bf16.mxu0 0
    %523 = vmatpush1.bf16.msra.mxu0 0
    %524 = vmatprep.subr.bf16.mxu0 0
    %525 = vmatpush1.bf16.msra.mxu0 0
    %526 = vmatprep.subr.bf16.mxu0 0
    %527 = vmatpush1.bf16.msra.mxu0 0
    %528 = vmatprep.mubr.bf16.mxu0 0
    %529 = vmatmul.mubr.bf16.gmra.mrb[0].mxu0 %v256
    %v530 = vpop.f32.mrb[0].mxu0
    %v531 = vadd.f32 %v491, %v530
    %v532 = vpop.f32.mrb[0].mxu0
    %v533 = vpop.f32.mrb[0].mxu0
    %v534 = vpop.f32.mrb[0].mxu0
    %535 = vdwg.mxu0
    %vm536 = vcmask 64512
    %537 = vst.msk [vmem:[#allocation2] sm:$0xff] %vm536, %v531
    // Predicated region
    $region22: #{gun_forward.1} parent=1 // pred_check
      _
    $region23: #{gun_forward.1} parent=1 // pred_check_branch
      %539 = sbr.rel (0) target = $region25
    $region24: #{gun_forward.1} parent=1 // pred_region
      %s541 = ssub.s32 128, 128
      %542 = vsyncadd [#allocation3], %s541
      %s544 = sshll.u32 [#allocation2], 4
      %s545 = int_to_ptr.vmem [resolvable:$true] %s544
      %547 = dma.vmem_to_hbm [thread:$0]  %s545, 128, %s5, [#allocation3]
    $region25: #{gun_forward.1} parent=1 // pred_fallthru
      _
    // Predicated region
    $region26: #{gun_forward.1} parent=1 // pred_check
      _
    $region27: #{gun_forward.1} parent=1 // pred_check_branch
      %549 = sbr.rel (0) target = $region29
    $region28: #{gun_forward.1} parent=1 // pred_region
      %550 = dma.done [#allocation3], 128
    $region29: #{gun_forward.1} parent=1 // pred_fallthru
      _
    %551 = vsyncpa [#allocation3], 1

</llo_original>
